<compile_context>
chip_gen: v5e
topology: v5e:2x2
jax: 0.10.0
libtpu: 0.0.40
codegen_flags: <defaults>
</compile_context>

<pallas_src>
import math
from functools import partial

import jax
import jax.numpy as jnp
from jax.experimental import pallas as pl
from jax.experimental.pallas import tpu as pltpu


# ----------------------------- tiling helper ------------------------------

def _pick_tile(dim, cap, aligns=(128, 8)):
    """Largest tile <= cap that divides `dim`, preferring the alignments in `aligns`
    (descending).  Full-extent blocks (dim <= cap) are always legal."""
    if dim <= cap:
        return dim
    for align in aligns:
        if dim % align == 0:
            t = (cap // align) * align
            while t >= align:
                if dim % t == 0:
                    return t
                t -= align
    # TODO(synk): awkward (non 8/128-aligned) dim -> one full-extent block; pad such
    # dims (e.g. an odd vocab size) up to a multiple of 128 upstream instead.
    return dim


# ----------------------------- generic linear ------------------------------

def _linear_kernel(x_ref, w_ref, b_ref, o_ref, acc_ref):
    """Tiled matmul + fused bias: o = x @ w + b (f32 accumulate)."""
    @pl.when(pl.program_id(2) == 0)
    def _init():
        acc_ref[...] = jnp.zeros_like(acc_ref)

    acc_ref[...] += jnp.dot(x_ref[...], w_ref[...],
                            preferred_element_type=jnp.float32)

    @pl.when(pl.program_id(2) == pl.num_programs(2) - 1)
    def _flush():
        o_ref[...] = (acc_ref[...] + b_ref[...]).astype(o_ref.dtype)


def pallas_linear(x2d, w, b, out_dtype=jnp.bfloat16):
    """x2d: (M, K) bf16, w: (K, N) bf16, b: (N,) f32 -> (M, N) out_dtype."""
    M, K = x2d.shape
    K2, Nf = w.shape
    assert K == K2
    # NOTE: on v5e/v6e these caps (and CompilerParams(vmem_limit_bytes=...)) can be
    # raised further; kept moderate so the defaults also fit v7x's 64 MiB VMEM.
    tm = _pick_tile(M, 256, (128, 8))
    tn = _pick_tile(Nf, 512, (256, 128))
    tk = _pick_tile(K, 512, (256, 128))
    grid = (M // tm, Nf // tn, K // tk)
    return pl.pallas_call(
        _linear_kernel,
        out_shape=jax.ShapeDtypeStruct((M, Nf), out_dtype),
        grid=grid,
        in_specs=[pl.BlockSpec((tm, tk), lambda i, j, k: (i, k)),
                  pl.BlockSpec((tk, tn), lambda i, j, k: (k, j)),
                  pl.BlockSpec((1, tn), lambda i, j, k: (0, j))],
        out_specs=pl.BlockSpec((tm, tn), lambda i, j, k: (i, j)),
        scratch_shapes=[pltpu.VMEM((tm, tn), jnp.float32)],
        compiler_params=pltpu.CompilerParams(
            dimension_semantics=("parallel", "parallel", "arbitrary")),
    )(x2d, w, b.reshape(1, Nf))


# ------------------- encoder input proj + LN + PE (fused) -------------------

def _in_proj_ln_pe_kernel(x_ref, w_ref, b_ref, g_ref, bb_ref, pe_ref, o_ref, *, eps):
    """o = LayerNorm(x @ w + b) * g + bb + PE   (one kernel, PE add fused)."""
    x = x_ref[0].astype(jnp.bfloat16)
    y = jnp.dot(x, w_ref[...], preferred_element_type=jnp.float32) + b_ref[...]
    mean = jnp.mean(y, axis=-1, keepdims=True)
    var = jnp.mean((y - mean) ** 2, axis=-1, keepdims=True)
    y = (y - mean) * jax.lax.rsqrt(var + eps) * g_ref[...] + bb_ref[...]
    o_ref[0] = (y + pe_ref[...]).astype(o_ref.dtype)


def pallas_in_proj_ln_pe(x3d, w, b, g, bb, pe, eps=1e-5):
    """x3d: (N, T, D_in) f32 features -> (N, T, D) bf16."""
    N, T, D_in = x3d.shape
    D = w.shape[1]
    tt = _pick_tile(T, 256, (128, 8))
    return pl.pallas_call(
        partial(_in_proj_ln_pe_kernel, eps=eps),
        out_shape=jax.ShapeDtypeStruct((N, T, D), jnp.bfloat16),
        grid=(N, T // tt),
        in_specs=[pl.BlockSpec((1, tt, D_in), lambda n, t: (n, t, 0)),
                  pl.BlockSpec((D_in, D), lambda n, t: (0, 0)),
                  pl.BlockSpec((1, D), lambda n, t: (0, 0)),
                  pl.BlockSpec((1, D), lambda n, t: (0, 0)),
                  pl.BlockSpec((1, D), lambda n, t: (0, 0)),
                  pl.BlockSpec((tt, D), lambda n, t: (t, 0))],
        out_specs=pl.BlockSpec((1, tt, D), lambda n, t: (n, t, 0)),
        compiler_params=pltpu.CompilerParams(
            dimension_semantics=("parallel", "parallel")),
    )(x3d, w, b.reshape(1, D), g.reshape(1, D), bb.reshape(1, D), pe)


# -------------------- decoder embedding scale + PE (fused) ------------------

def _scale_pe_kernel(e_ref, pe_ref, o_ref, *, scale):
    o_ref[0] = (e_ref[0].astype(jnp.float32) * scale + pe_ref[...]).astype(o_ref.dtype)


def pallas_scale_pe(emb3d, pe, scale):
    N, T, D = emb3d.shape
    tt = _pick_tile(T, 256, (128, 8))
    return pl.pallas_call(
        partial(_scale_pe_kernel, scale=scale),
        out_shape=jax.ShapeDtypeStruct((N, T, D), jnp.bfloat16),
        grid=(N, T // tt),
        in_specs=[pl.BlockSpec((1, tt, D), lambda n, t: (n, t, 0)),
                  pl.BlockSpec((tt, D), lambda n, t: (t, 0))],
        out_specs=pl.BlockSpec((1, tt, D), lambda n, t: (n, t, 0)),
        compiler_params=pltpu.CompilerParams(
            dimension_semantics=("parallel", "parallel")),
    )(emb3d, pe)


# ------------------ attention output proj + residual + LN -------------------

def _proj_resid_ln_kernel(a_ref, w_ref, b_ref, r_ref, g_ref, bb_ref, o_ref, *, eps):
    """o = LayerNorm(residual + a @ w + b)."""
    y = jnp.dot(a_ref[...], w_ref[...], preferred_element_type=jnp.float32)
    y = y + b_ref[...] + r_ref[...].astype(jnp.float32)
    mean = jnp.mean(y, axis=-1, keepdims=True)
    var = jnp.mean((y - mean) ** 2, axis=-1, keepdims=True)
    o_ref[...] = ((y - mean) * jax.lax.rsqrt(var + eps) * g_ref[...]
                  + bb_ref[...]).astype(o_ref.dtype)


def pallas_proj_resid_ln(a2d, w, b, resid2d, g, bb, eps=1e-5):
    M, K = a2d.shape
    D = w.shape[1]
    tm = _pick_tile(M, 256, (128, 8))
    return pl.pallas_call(
        partial(_proj_resid_ln_kernel, eps=eps),
        out_shape=jax.ShapeDtypeStruct((M, D), jnp.bfloat16),
        grid=(M // tm,),
        in_specs=[pl.BlockSpec((tm, K), lambda i: (i, 0)),
                  pl.BlockSpec((K, D), lambda i: (0, 0)),
                  pl.BlockSpec((1, D), lambda i: (0, 0)),
                  pl.BlockSpec((tm, D), lambda i: (i, 0)),
                  pl.BlockSpec((1, D), lambda i: (0, 0)),
                  pl.BlockSpec((1, D), lambda i: (0, 0))],
        out_specs=pl.BlockSpec((tm, D), lambda i: (i, 0)),
        compiler_params=pltpu.CompilerParams(dimension_semantics=("parallel",)),
    )(a2d, w, b.reshape(1, D), resid2d, g.reshape(1, D), bb.reshape(1, D))


# -------------------------- fused FFN + residual + LN ------------------------

def _ffn_resid_ln_kernel(x_ref, w1_ref, b1_ref, w2_ref, b2_ref, g_ref, bb_ref,
                         o_ref, acc_ref, *, eps):
    """o = LayerNorm(x + relu(x @ w1 + b1) @ w2 + b2), tiled over the Dff axis so
    only a (D, tf) + (tf, D) weight slice is VMEM-resident per step."""
    j = pl.program_id(1)

    @pl.when(j == 0)
    def _init():
        acc_ref[...] = jnp.zeros_like(acc_ref)

    x = x_ref[...]
    h = jnp.dot(x, w1_ref[...], preferred_element_type=jnp.float32) + b1_ref[...]
    h = jnp.maximum(h, 0.0)
    acc_ref[...] += jnp.dot(h.astype(x.dtype), w2_ref[...],
                            preferred_element_type=jnp.float32)

    @pl.when(j == pl.num_programs(1) - 1)
    def _flush():
        y = acc_ref[...] + b2_ref[...] + x.astype(jnp.float32)
        mean = jnp.mean(y, axis=-1, keepdims=True)
        var = jnp.mean((y - mean) ** 2, axis=-1, keepdims=True)
        o_ref[...] = ((y - mean) * jax.lax.rsqrt(var + eps) * g_ref[...]
                      + bb_ref[...]).astype(o_ref.dtype)


def pallas_ffn_resid_ln(x2d, w1, b1, w2, b2, g, bb, eps=1e-5):
    M, D = x2d.shape
    Dff = w1.shape[1]
    tm = _pick_tile(M, 256, (128, 8))
    tf = _pick_tile(Dff, 512, (256, 128))
    return pl.pallas_call(
        partial(_ffn_resid_ln_kernel, eps=eps),
        out_shape=jax.ShapeDtypeStruct((M, D), jnp.bfloat16),
        grid=(M // tm, Dff // tf),
        in_specs=[pl.BlockSpec((tm, D), lambda i, j: (i, 0)),
                  pl.BlockSpec((D, tf), lambda i, j: (0, j)),
                  pl.BlockSpec((1, tf), lambda i, j: (0, j)),
                  pl.BlockSpec((tf, D), lambda i, j: (j, 0)),
                  pl.BlockSpec((1, D), lambda i, j: (0, 0)),
                  pl.BlockSpec((1, D), lambda i, j: (0, 0)),
                  pl.BlockSpec((1, D), lambda i, j: (0, 0))],
        out_specs=pl.BlockSpec((tm, D), lambda i, j: (i, 0)),
        scratch_shapes=[pltpu.VMEM((tm, D), jnp.float32)],
        compiler_params=pltpu.CompilerParams(
            dimension_semantics=("parallel", "arbitrary")),
    )(x2d, w1, b1.reshape(1, Dff), w2, b2.reshape(1, D),
      g.reshape(1, D), bb.reshape(1, D))


# ------------------------------- attention ----------------------------------

def _mha_head_kernel(len_ref, q_ref, k_ref, v_ref, o_ref, *, scale, causal, use_len):
    """One (batch, head, q-tile) per grid step.  Q/K/V head blocks are selected at
    DMA time by the BlockSpec lane-block index_maps; masks (key-padding / causal)
    are built in-kernel from the scalar-prefetched lengths + iota."""
    b = pl.program_id(0)
    q = q_ref[0] * scale          # softmax scale folded into q (tq*dh muls)
    k = k_ref[0]
    v = v_ref[0]
    tq, dh = q.shape
    tk = k.shape[0]

    # scores: (tq, dh) x (tk, dh)^T -> (tq, tk), f32 MXU accumulation
    s = jax.lax.dot_general(q, k, (((1,), (1,)), ((), ())),
                            preferred_element_type=jnp.float32)

    if use_len or causal:
        neg = jnp.float32(-1e9)
        kv_idx = jax.lax.broadcasted_iota(jnp.int32, (tq, tk), 1)
        mask = jnp.zeros((tq, tk), jnp.float32)
        if use_len:
            mask = jnp.where(kv_idx < len_ref[b], mask, neg)
        if causal:
            q_idx = pl.program_id(2) * tq + jax.lax.broadcasted_iota(
                jnp.int32, (tq, tk), 0)
            mask = jnp.where(kv_idx <= q_idx, mask, neg)
        s = s + mask

    s = s - jnp.max(s, axis=-1, keepdims=True)
    p = jnp.exp(s)
    p = p * pl.reciprocal(jnp.sum(p, axis=-1, keepdims=True), approx=True)
    o_ref[0] = jnp.dot(p.astype(v.dtype), v,
                       preferred_element_type=jnp.float32).astype(o_ref.dtype)


def pallas_self_attention(qkv, lengths, n_heads, *, causal, use_len):
    """qkv: (N, T, 3D) fused projection (bf16) -> (N, T, D) bf16.
    Q/K/V and the head split are carved out of `qkv` at DMA time (lane-block
    index_maps); nothing is sliced in HBM."""
    N, T, threeD = qkv.shape
    D = threeD // 3
    dh = D // n_heads
    assert dh % 128 == 0, "head_dim must be a multiple of 128 for DMA-time head split"
    H = n_heads
    tq = _pick_tile(T, 256, (128, 8))
    scale = 1.0 / math.sqrt(dh)
    kern = partial(_mha_head_kernel, scale=scale, causal=causal, use_len=use_len)
    # TODO(synk): for long sequences convert the K/V extent into an inner
    # online-softmax (flash) loop instead of whole-(Tk) blocks.
    grid_spec = pltpu.PrefetchScalarGridSpec(
        num_scalar_prefetch=1,
        grid=(N, H, T // tq),
        in_specs=[pl.BlockSpec((1, tq, dh), lambda b, h, t, lens: (b, t, h)),
                  pl.BlockSpec((1, T, dh), lambda b, h, t, lens: (b, 0, H + h)),
                  pl.BlockSpec((1, T, dh), lambda b, h, t, lens: (b, 0, 2 * H + h))],
        out_specs=pl.BlockSpec((1, tq, dh), lambda b, h, t, lens: (b, t, h)),
    )
    return pl.pallas_call(
        kern,
        out_shape=jax.ShapeDtypeStruct((N, T, D), jnp.bfloat16),
        grid_spec=grid_spec,
        compiler_params=pltpu.CompilerParams(
            dimension_semantics=("parallel", "parallel", "parallel")),
    )(lengths.astype(jnp.int32), qkv, qkv, qkv)


def pallas_cross_attention(q, kv, lengths, n_heads):
    """q: (N, Tq, D) bf16, kv: (N, Tk, 2D) fused encoder K/V projection (bf16)."""
    N, Tq, D = q.shape
    Tk = kv.shape[1]
    dh = D // n_heads
    assert dh % 128 == 0, "head_dim must be a multiple of 128 for DMA-time head split"
    H = n_heads
    tq = _pick_tile(Tq, 256, (128, 8))
    scale = 1.0 / math.sqrt(dh)
    kern = partial(_mha_head_kernel, scale=scale, causal=False, use_len=True)
    grid_spec = pltpu.PrefetchScalarGridSpec(
        num_scalar_prefetch=1,
        grid=(N, H, Tq // tq),
        in_specs=[pl.BlockSpec((1, tq, dh), lambda b, h, t, lens: (b, t, h)),
                  pl.BlockSpec((1, Tk, dh), lambda b, h, t, lens: (b, 0, h)),
                  pl.BlockSpec((1, Tk, dh), lambda b, h, t, lens: (b, 0, H + h))],
        out_specs=pl.BlockSpec((1, tq, dh), lambda b, h, t, lens: (b, t, h)),
    )
    return pl.pallas_call(
        kern,
        out_shape=jax.ShapeDtypeStruct((N, Tq, D), jnp.bfloat16),
        grid_spec=grid_spec,
        compiler_params=pltpu.CompilerParams(
            dimension_semantics=("parallel", "parallel", "parallel")),
    )(lengths.astype(jnp.int32), q, kv, kv)


# --------------------------- parameter init (glue) ---------------------------

def _xavier(key, shape):
    fan_in, fan_out = shape[0], shape[1]
    limit = math.sqrt(6.0 / (fan_in + fan_out))
    return jax.random.uniform(key, shape, jnp.float32, -limit, limit)


def _self_mha_params(key, d):
    ks = jax.random.split(key, 2)
    return {
        "wqkv": _xavier(ks[0], (d, 3 * d)).astype(jnp.bfloat16),
        "bqkv": jnp.zeros((3 * d,), jnp.float32),
        "wo": _xavier(ks[1], (d, d)).astype(jnp.bfloat16),
        "bo": jnp.zeros((d,), jnp.float32),
        "ln_g": jnp.ones((d,), jnp.float32), "ln_b": jnp.zeros((d,), jnp.float32),
    }


def _cross_mha_params(key, d):
    ks = jax.random.split(key, 3)
    return {
        "wq": _xavier(ks[0], (d, d)).astype(jnp.bfloat16),
        "bq": jnp.zeros((d,), jnp.float32),
        "wkv": _xavier(ks[1], (d, 2 * d)).astype(jnp.bfloat16),
        "bkv": jnp.zeros((2 * d,), jnp.float32),
        "wo": _xavier(ks[2], (d, d)).astype(jnp.bfloat16),
        "bo": jnp.zeros((d,), jnp.float32),
        "ln_g": jnp.ones((d,), jnp.float32), "ln_b": jnp.zeros((d,), jnp.float32),
    }


def _ffn_params(key, d, dff):
    k1, k2 = jax.random.split(key)
    return {
        "w1": _xavier(k1, (d, dff)).astype(jnp.bfloat16),
        "b1": jnp.zeros((dff,), jnp.float32),
        "w2": _xavier(k2, (dff, d)).astype(jnp.bfloat16),
        "b2": jnp.zeros((d,), jnp.float32),
        "ln_g": jnp.ones((d,), jnp.float32), "ln_b": jnp.zeros((d,), jnp.float32),
    }


def init_params(key, d_input, d_model, d_ff, n_heads, n_layers, vocab):
    keys = jax.random.split(key, 8)
    enc_layers, dec_layers = [], []
    for li in range(n_layers):
        k = jax.random.fold_in(keys[0], li)
        ka, kf = jax.random.split(k)
        enc_layers.append({"attn": _self_mha_params(ka, d_model),
                           "ffn": _ffn_params(kf, d_model, d_ff)})
        k = jax.random.fold_in(keys[1], li)
        ka, kc, kf = jax.random.split(k, 3)
        dec_layers.append({"self_attn": _self_mha_params(ka, d_model),
                           "cross_attn": _cross_mha_params(kc, d_model),
                           "ffn": _ffn_params(kf, d_model, d_ff)})
    return {
        "enc_in_w": _xavier(keys[2], (d_input, d_model)).astype(jnp.bfloat16),
        "enc_in_b": jnp.zeros((d_model,), jnp.float32),
        "enc_in_ln_g": jnp.ones((d_model,), jnp.float32),
        "enc_in_ln_b": jnp.zeros((d_model,), jnp.float32),
        "enc_layers": enc_layers,
        "dec_emb": _xavier(keys[3], (vocab, d_model)).astype(jnp.bfloat16),
        "dec_layers": dec_layers,
        "dec_out_w": _xavier(keys[4], (d_model, vocab)).astype(jnp.bfloat16),
        "dec_out_b": jnp.zeros((vocab,), jnp.float32),
        "n_heads": n_heads,
    }


# ------------------------------ model (glue + kernels) ------------------------------

def sinusoid_pe(T, d_model):
    pos = jnp.arange(T, dtype=jnp.float32)[:, None]
    i = jnp.arange(d_model, dtype=jnp.float32)[None, :]
    angle = pos / jnp.power(10000.0, (2.0 * jnp.floor(i / 2.0)) / d_model)
    pe = jnp.where(jnp.mod(jnp.arange(d_model), 2) == 0, jnp.sin(angle), jnp.cos(angle))
    return pe  # (T, d_model)


def self_attention_block(x, lengths, p, n_heads, *, causal, use_len):
    """x: (N, T, D) bf16 -> LN(x + MHA(x, x, x) @ Wo + bo)."""
    N, T, D = x.shape
    x2d = x.reshape(-1, D)
    qkv = pallas_linear(x2d, p["wqkv"], p["bqkv"]).reshape(N, T, 3 * D)
    attn = pallas_self_attention(qkv, lengths, n_heads, causal=causal, use_len=use_len)
    out = pallas_proj_resid_ln(attn.reshape(-1, D), p["wo"], p["bo"],
                               x2d, p["ln_g"], p["ln_b"])
    return out.reshape(N, T, D)


def cross_attention_block(x, enc, lengths, p, n_heads):
    N, Tq, D = x.shape
    Tk = enc.shape[1]
    x2d = x.reshape(-1, D)
    q = pallas_linear(x2d, p["wq"], p["bq"]).reshape(N, Tq, D)
    kv = pallas_linear(enc.reshape(-1, D), p["wkv"], p["bkv"]).reshape(N, Tk, 2 * D)
    attn = pallas_cross_attention(q, kv, lengths, n_heads)
    out = pallas_proj_resid_ln(attn.reshape(-1, D), p["wo"], p["bo"],
                               x2d, p["ln_g"], p["ln_b"])
    return out.reshape(N, Tq, D)


def ffn_block(x, p):
    N, T, D = x.shape
    out = pallas_ffn_resid_ln(x.reshape(-1, D), p["w1"], p["b1"],
                              p["w2"], p["b2"], p["ln_g"], p["ln_b"])
    return out.reshape(N, T, D)


def encoder_forward(params, padded_input, input_lengths):
    N, T_in, D_in = padded_input.shape
    d_model = params["enc_in_w"].shape[1]
    n_heads = params["n_heads"]

    pe = sinusoid_pe(T_in, d_model)
    x = pallas_in_proj_ln_pe(padded_input, params["enc_in_w"], params["enc_in_b"],
                             params["enc_in_ln_g"], params["enc_in_ln_b"], pe)

    for layer in params["enc_layers"]:
        x = self_attention_block(x, input_lengths, layer["attn"], n_heads,
                                 causal=False, use_len=True)
        x = ffn_block(x, layer["ffn"])
    return x


def decoder_forward(params, padded_target, encoder_outputs, input_lengths, sos_id=1):
    N, T_out = padded_target.shape
    d_model = encoder_outputs.shape[2]
    n_heads = params["n_heads"]
    vocab = params["dec_emb"].shape[0]

    # teacher forcing: shift targets right with <sos>; gold = padded_target
    ys_in = jnp.concatenate(
        [jnp.full((N, 1), sos_id, padded_target.dtype), padded_target[:, :-1]], axis=1)
    gold = padded_target

    emb = jnp.take(params["dec_emb"], ys_in, axis=0)              # (N, T_out, D) bf16
    x = pallas_scale_pe(emb, sinusoid_pe(T_out, d_model), math.sqrt(d_model))

    for layer in params["dec_layers"]:
        # TODO(synk): the reference decoder also masks padded target keys (non-pad mask
        # combined with the subsequent mask); only the causal mask is applied here.
        x = self_attention_block(x, input_lengths, layer["self_attn"], n_heads,
                                 causal=True, use_len=False)
        x = cross_attention_block(x, encoder_outputs, input_lengths,
                                  layer["cross_attn"], n_heads)
        x = ffn_block(x, layer["ffn"])

    pred = pallas_linear(x.reshape(-1, d_model), params["dec_out_w"],
                         params["dec_out_b"], out_dtype=jnp.float32)
    return pred.reshape(N, T_out, vocab), gold


def transformer_forward(params, padded_input, input_lengths, padded_target):
    enc_out = encoder_forward(params, padded_input, input_lengths)
    pred, gold = decoder_forward(params, padded_target, enc_out, input_lengths)
    return pred, gold


# ----------------------------------- main -----------------------------------

if __name__ == "__main__":
    # small, deterministic config (lane-friendly: d_model/vocab multiples of 128,
    # head_dim = 128)
    N, T_in, D_in = 2, 16, 32
    T_out, vocab = 8, 256
    d_model, n_heads, d_ff, n_layers = 256, 2, 512, 2

    key = jax.random.PRNGKey(0)
    kp, kx, kt = jax.random.split(key, 3)

    params = init_params(kp, D_in, d_model, d_ff, n_heads, n_layers, vocab)

    padded_input = jax.random.normal(kx, (N, T_in, D_in), jnp.float32)    # N x T_input x D
    input_lengths = jnp.array([16, 11], dtype=jnp.int32)                  # N
    padded_target = jax.random.randint(kt, (N, T_out), 2, vocab)          # N x T_output

    # TODO(synk): the reference repo's Encoder/Decoder classes were not provided; the
    # standard speech-transformer encoder/decoder forward is implemented above, and
    # recognize() (beam search) is inference-only control flow, not implemented.
    pred, gold = transformer_forward(params, padded_input, input_lengths, padded_target)
    jax.block_until_ready(pred)
    jax.block_until_ready(gold)

    assert pred.shape == (N, T_out, vocab) and gold.shape == (N, T_out)
    assert bool(jnp.all(jnp.isfinite(pred)))
    print("KERNEL_OK")
</pallas_src>

<mosaic_0001>
module attributes {stable_mosaic.version = 11 : i64} {
  func.func @_in_proj_ln_pe_kernel(%arg0: i32, %arg1: i32, %arg2: memref<1x16x32xf32, #tpu.memory_space<vmem>>, %arg3: memref<32x256xbf16, #tpu.memory_space<vmem>>, %arg4: memref<1x256xf32, #tpu.memory_space<vmem>>, %arg5: memref<1x256xf32, #tpu.memory_space<vmem>>, %arg6: memref<1x256xf32, #tpu.memory_space<vmem>>, %arg7: memref<16x256xf32, #tpu.memory_space<vmem>>, %arg8: memref<1x16x256xbf16, #tpu.memory_space<vmem>>) attributes {dimension_semantics = [#tpu.dimension_semantics<parallel>, #tpu.dimension_semantics<parallel>], iteration_bounds = array<i64: 2, 1>, scalar_prefetch = 0 : i64, scratch_operands = 0 : i64, tpu.core_type = #tpu.core_type<tc>, window_params = [{transform_indices = @transform_0, window_bounds = array<i64: 1, 16, 32>}, {pipeline_mode = #tpu.pipeline_mode<synchronous>, transform_indices = @transform_1, window_bounds = array<i64: 32, 256>}, {pipeline_mode = #tpu.pipeline_mode<synchronous>, transform_indices = @transform_2, window_bounds = array<i64: 1, 256>}, {pipeline_mode = #tpu.pipeline_mode<synchronous>, transform_indices = @transform_3, window_bounds = array<i64: 1, 256>}, {pipeline_mode = #tpu.pipeline_mode<synchronous>, transform_indices = @transform_4, window_bounds = array<i64: 1, 256>}, {transform_indices = @transform_5, window_bounds = array<i64: 16, 256>}, {transform_indices = @transform_6, window_bounds = array<i64: 1, 16, 256>}]} {
    %c0 = arith.constant 0 : index
    %c0_0 = arith.constant 0 : index
    %c0_1 = arith.constant 0 : index
    %0 = vector.load %arg2[%c0, %c0_0, %c0_1] : memref<1x16x32xf32, #tpu.memory_space<vmem>>, vector<1x16x32xf32>
    %1 = vector.shape_cast %0 : vector<1x16x32xf32> to vector<16x32xf32>
    %2 = arith.truncf %1 : vector<16x32xf32> to vector<16x32xbf16>
    %c0_2 = arith.constant 0 : index
    %c0_3 = arith.constant 0 : index
    %3 = vector.load %arg3[%c0_2, %c0_3] : memref<32x256xbf16, #tpu.memory_space<vmem>>, vector<32x256xbf16>
    %cst = arith.constant dense<0.000000e+00> : vector<16x256xf32>
    %4 = tpu.matmul %2, %3, %cst {dimension_numbers = #tpu.dot_dimension_numbers<[1], [0], [0], [1], [0, 0, 1, 1], [], []>} : vector<16x32xbf16>, vector<32x256xbf16>, vector<16x256xf32> -> vector<16x256xf32>
    %c0_4 = arith.constant 0 : index
    %c0_5 = arith.constant 0 : index
    %5 = vector.load %arg4[%c0_4, %c0_5] : memref<1x256xf32, #tpu.memory_space<vmem>>, vector<1x256xf32>
    %6 = vector.broadcast %5 : vector<1x256xf32> to vector<16x256xf32>
    %7 = arith.addf %4, %6 : vector<16x256xf32>
    %cst_6 = arith.constant dense<0.000000e+00> : vector<16xf32>
    %8 = vector.multi_reduction <add>, %7, %cst_6 [1] : vector<16x256xf32> to vector<16xf32>
    %9 = vector.shape_cast %8 : vector<16xf32> to vector<16x1xf32>
    %cst_7 = arith.constant 2.560000e+02 : f32
    %10 = vector.broadcast %cst_7 : f32 to vector<16x1xf32>
    %11 = arith.divf %9, %10 : vector<16x1xf32>
    %12 = vector.broadcast %11 : vector<16x1xf32> to vector<16x256xf32>
    %13 = arith.subf %7, %12 : vector<16x256xf32>
    %14 = arith.mulf %13, %13 : vector<16x256xf32>
    %cst_8 = arith.constant dense<0.000000e+00> : vector<16xf32>
    %15 = vector.multi_reduction <add>, %14, %cst_8 [1] : vector<16x256xf32> to vector<16xf32>
    %16 = vector.shape_cast %15 : vector<16xf32> to vector<16x1xf32>
    %cst_9 = arith.constant 2.560000e+02 : f32
    %17 = vector.broadcast %cst_9 : f32 to vector<16x1xf32>
    %18 = arith.divf %16, %17 : vector<16x1xf32>
    %19 = vector.broadcast %11 : vector<16x1xf32> to vector<16x256xf32>
    %20 = arith.subf %7, %19 : vector<16x256xf32>
    %cst_10 = arith.constant 9.99999974E-6 : f32
    %21 = vector.broadcast %cst_10 : f32 to vector<16x1xf32>
    %22 = arith.addf %18, %21 : vector<16x1xf32>
    %23 = math.rsqrt %22 : vector<16x1xf32>
    %24 = vector.broadcast %23 : vector<16x1xf32> to vector<16x256xf32>
    %25 = arith.mulf %20, %24 : vector<16x256xf32>
    %c0_11 = arith.constant 0 : index
    %c0_12 = arith.constant 0 : index
    %26 = vector.load %arg5[%c0_11, %c0_12] : memref<1x256xf32, #tpu.memory_space<vmem>>, vector<1x256xf32>
    %27 = vector.broadcast %26 : vector<1x256xf32> to vector<16x256xf32>
    %28 = arith.mulf %25, %27 : vector<16x256xf32>
    %c0_13 = arith.constant 0 : index
    %c0_14 = arith.constant 0 : index
    %29 = vector.load %arg6[%c0_13, %c0_14] : memref<1x256xf32, #tpu.memory_space<vmem>>, vector<1x256xf32>
    %30 = vector.broadcast %29 : vector<1x256xf32> to vector<16x256xf32>
    %31 = arith.addf %28, %30 : vector<16x256xf32>
    %c0_15 = arith.constant 0 : index
    %c0_16 = arith.constant 0 : index
    %32 = vector.load %arg7[%c0_15, %c0_16] : memref<16x256xf32, #tpu.memory_space<vmem>>, vector<16x256xf32>
    %33 = arith.addf %31, %32 : vector<16x256xf32>
    %34 = arith.truncf %33 : vector<16x256xf32> to vector<16x256xbf16>
    %c0_17 = arith.constant 0 : index
    %c0_18 = arith.constant 0 : index
    %c0_19 = arith.constant 0 : index
    %35 = vector.load %arg8[%c0_17, %c0_18, %c0_19] : memref<1x16x256xbf16, #tpu.memory_space<vmem>>, vector<1x16x256xbf16>
    %36 = vector.shape_cast %35 : vector<1x16x256xbf16> to vector<16x256xbf16>
    %37 = vector.shape_cast %34 : vector<16x256xbf16> to vector<1x16x256xbf16>
    tpu.vector_store %arg8[%c0_17, %c0_18, %c0_19], %37 {strides = array<i32>} : memref<1x16x256xbf16, #tpu.memory_space<vmem>>, vector<1x16x256xbf16>,
    return
  }
  func.func @transform_0(%arg0: i32, %arg1: i32) -> (i32, i32, i32) {
    %c0_i32 = arith.constant 0 : i32
    %c0_i32_0 = arith.constant 0 : i32
    return %arg0, %arg1, %c0_i32 : i32, i32, i32
  }
  func.func @transform_1(%arg0: i32, %arg1: i32) -> (i32, i32) {
    %c0_i32 = arith.constant 0 : i32
    %c0_i32_0 = arith.constant 0 : i32
    %c0_i32_1 = arith.constant 0 : i32
    return %c0_i32, %c0_i32_0 : i32, i32
  }
  func.func @transform_2(%arg0: i32, %arg1: i32) -> (i32, i32) {
    %c0_i32 = arith.constant 0 : i32
    %c0_i32_0 = arith.constant 0 : i32
    %c0_i32_1 = arith.constant 0 : i32
    return %c0_i32, %c0_i32_0 : i32, i32
  }
  func.func @transform_3(%arg0: i32, %arg1: i32) -> (i32, i32) {
    %c0_i32 = arith.constant 0 : i32
    %c0_i32_0 = arith.constant 0 : i32
    %c0_i32_1 = arith.constant 0 : i32
    return %c0_i32, %c0_i32_0 : i32, i32
  }
  func.func @transform_4(%arg0: i32, %arg1: i32) -> (i32, i32) {
    %c0_i32 = arith.constant 0 : i32
    %c0_i32_0 = arith.constant 0 : i32
    %c0_i32_1 = arith.constant 0 : i32
    return %c0_i32, %c0_i32_0 : i32, i32
  }
  func.func @transform_5(%arg0: i32, %arg1: i32) -> (i32, i32) {
    %c0_i32 = arith.constant 0 : i32
    %c0_i32_0 = arith.constant 0 : i32
    return %arg1, %c0_i32 : i32, i32
  }
  func.func @transform_6(%arg0: i32, %arg1: i32) -> (i32, i32, i32) {
    %c0_i32 = arith.constant 0 : i32
    %c0_i32_0 = arith.constant 0 : i32
    return %arg0, %arg1, %c0_i32 : i32, i32, i32
  }
}

</mosaic_0001>

<llo_original>
// kernel: tpu_custom_call.1
$region0: #{tpu_custom_call.1}
  #allocation0 [shape = 'u32[]', space=smem, size = 0x4, offset = 0x4, fixed_abs, tag = 'smem constant byte address 0x4 - core index']
  #allocation1 [shape = 'u32[72,128]{1,0:T(1,128)}', space=vmem, size = 0x9000, scoped, tag = 'internal scratch']
  %s0 = inlined_call_operand.hbm [shape: f32[2,16,32], index: 0, kind: input, shape index: {}]
  %s1 = inlined_call_operand.hbm [shape: bf16[32,256], index: 1, kind: input, shape index: {}]
  %s2 = inlined_call_operand.hbm [shape: f32[1,256], index: 2, kind: input, shape index: {}]
  %s3 = inlined_call_operand.vmem [shape: f32[1,256], index: 3, kind: input, shape index: {}]
  %s4 = inlined_call_operand.hbm [shape: f32[1,256], index: 4, kind: input, shape index: {}]
  %s5 = inlined_call_operand.hbm [shape: f32[16,256], index: 5, kind: input, shape index: {}]
  %s6 = inlined_call_operand.hbm [shape: bf16[2,16,256], index: 6, kind: output, shape index: {}]
  %s7 = sld [smem:[#allocation0]]
  $region77: #{tpu_custom_call.1} parent=0
    _
  %s9 = ssub.s32 1, %s7
  %s10 = scalar_select 0, %s9, %s7
  $region1: #{tpu_custom_call.1} parent=0
    #allocation2 [shape = 'u8[16384]{0}', space=vmem, size = 0x4000, scoped, tag = 'input window, operand 0']
    #allocation3 [shape = 's32[2]{0}', space=sflag, size = 0x8, scoped, tag = 'scoped memory for tpu_custom_call.1']
    #allocation4 [shape = 's32[2]{0}', space=sflag, size = 0x8, scoped, tag = 'scoped memory for tpu_custom_call.1']
    #allocation5 [shape = 'u8[16384]{0}', space=vmem, size = 0x4000, scoped, tag = 'input window, operand 1, single buffered']
    #allocation6 [shape = 's32[1]{0}', space=sflag, size = 0x4, scoped, tag = 'scoped memory for tpu_custom_call.1']
    #allocation7 [shape = 'u8[1024]{0}', space=vmem, size = 0x400, scoped, tag = 'input window, operand 2, single buffered']
    #allocation8 [shape = 'u8[1024]{0}', space=vmem, size = 0x400, scoped, tag = 'input window, operand 4, single buffered']
    #allocation9 [shape = 's32[1]{0}', space=sflag, size = 0x4, scoped, tag = 'scoped memory for tpu_custom_call.1']
    #allocation10 [shape = 'u8[16384]{0}', space=vmem, size = 0x4000, scoped, tag = 'input window, operand 5, single buffered']
    #allocation11 [shape = 'u8[16384]{0}', space=vmem, size = 0x4000, scoped, tag = 'output window, operand 0']
    %11 = vsyncpa [#allocation3], 0
    %s12 = scalar_lea.sflag [#allocation3], 1
    %13 = vsyncpa %s12, 0
    %14 = vsyncpa [#allocation6], 0
    %15 = vsyncpa [#allocation9], 0
    %16 = vsyncpa [#allocation4], 0
    %s17 = scalar_lea.sflag [#allocation4], 1
    %18 = vsyncpa %s17, 0
    loop: start=0, step=1, limit=4
    $region2: #{tpu_custom_call.1} parent=1 // loop_pre_header
      _
    $region3: #{tpu_custom_call.1} parent=1 // loop_header
      %s20 = sphi 0, %s24
      %p21 = scmp.ge.s32.totalorder %s20, 4
      %s27 = sphi 0, %s39
      %s28 = sphi 0, %s35
      %s29 = sphi 0, %s27
      %s30 = sphi 0, %s28
      %s31 = sphi 0, %s29
      %s32 = sphi 0, %s30
      %s44 = sphi 0, %s46
      %s47 = sphi 0, %s44
      %s48 = sphi 0, %s47
      %s64 = sphi 0, %s48
      %s68 = sphi 0, %s68
      %s70 = sphi 0, %s68
      %s71 = sphi 0, %s70
      %s85 = sphi 0, %s71
      %s89 = sphi 0, %s89
      %s91 = sphi 0, %s89
      %s92 = sphi 0, %s91
      %s106 = sphi 0, %s92
      %s110 = sphi 0, %s110
      %s112 = sphi 0, %s110
      %s113 = sphi 0, %s112
      %s127 = sphi 0, %s113
      %s131 = sphi 0, %s131
      %s133 = sphi 0, %s131
      %s134 = sphi 0, %s133
      %s148 = sphi 0, %s134
      %s154 = sphi 0, %s156
      %s157 = sphi 0, %s154
      %s158 = sphi 0, %s157
      %s174 = sphi 0, %s158
      %s182 = sphi 0, %s184
      %s185 = sphi 0, %s182
      %s186 = sphi 0, %s185
      %s202 = sphi 0, %s186
    $region4: #{tpu_custom_call.1} parent=1 // loop_header_branch
      %23 = sbr.rel (%p21) target = $region8
    $region5: #{tpu_custom_call.1} parent=1 // loop_body
      %s25 = ssub.s32 %s20, 1
      %s26 = ssub.s32 %s20, 2
      %s33 = sadd.s32 1, %s28
      %p34 = scmp.ge.s32.totalorder %s33, 1
      %s35 = scalar_select %p34, 0, %s33
      %s36 = sadd.s32 1, %s27
      %s37 = scalar_select %p34, %s36, %s27
      %p38 = scmp.ge.s32.totalorder %s37, 2
      %s39 = scalar_select %p38, 0, %s37
      %s40 = ssub.s32 %s27, %s39
      %s41 = ssub.s32 %s28, %s35
      %s42 = sor.u32 %s40, %s41
      %p43 = scmp.eq.s32.totalorder %s42, 0
      %s45 = sadd.s32 %s44, 1
      %s46 = scalar_select %p43, %s44, %s45
      %p49 = pneg %p43
      %p50 = scmp.eq.s32.totalorder %s20, 1
      %p51 = por %p49, %p50
      %p52 = scmp.ne.s32.totalorder %s44, %s47
      %p53 = scmp.eq.s32.totalorder %s20, 0
      %p54 = por %p52, %p53
      %p55 = scmp.ne.s32.totalorder %s44, %s47
      %p56 = scmp.eq.s32.totalorder %s25, 1
      %p57 = por %p55, %p56
      %p58 = scmp.ne.s32.totalorder %s47, %s48
      %p59 = scmp.eq.s32.totalorder %s25, 0
      %p60 = por %p58, %p59
      %p61 = scmp.ne.s32.totalorder %s47, %s48
      %p62 = scmp.eq.s32.totalorder %s26, 1
      %p63 = por %p61, %p62
      %p65 = scmp.ne.s32.totalorder %s48, %s64
      %p66 = scmp.eq.s32.totalorder %s26, 0
      %p67 = por %p65, %p66
      %s69 = sadd.s32 %s68, 1
      %p72 = scmp.eq.s32.totalorder %s20, 1
      %p73 = scmp.ne.s32.totalorder %s68, %s70
      %p74 = scmp.eq.s32.totalorder %s20, 0
      %p75 = por %p73, %p74
      %p76 = scmp.ne.s32.totalorder %s68, %s70
      %p77 = scmp.eq.s32.totalorder %s25, 1
      %p78 = por %p76, %p77
      %p79 = scmp.ne.s32.totalorder %s70, %s71
      %p80 = scmp.eq.s32.totalorder %s25, 0
      %p81 = por %p79, %p80
      %p82 = scmp.ne.s32.totalorder %s70, %s71
      %p83 = scmp.eq.s32.totalorder %s26, 1
      %p84 = por %p82, %p83
      %p86 = scmp.ne.s32.totalorder %s71, %s85
      %p87 = scmp.eq.s32.totalorder %s26, 0
      %p88 = por %p86, %p87
      %s90 = sadd.s32 %s89, 1
      %p93 = scmp.eq.s32.totalorder %s20, 1
      %p94 = scmp.ne.s32.totalorder %s89, %s91
      %p95 = scmp.eq.s32.totalorder %s20, 0
      %p96 = por %p94, %p95
      %p97 = scmp.ne.s32.totalorder %s89, %s91
      %p98 = scmp.eq.s32.totalorder %s25, 1
      %p99 = por %p97, %p98
      %p100 = scmp.ne.s32.totalorder %s91, %s92
      %p101 = scmp.eq.s32.totalorder %s25, 0
      %p102 = por %p100, %p101
      %p103 = scmp.ne.s32.totalorder %s91, %s92
      %p104 = scmp.eq.s32.totalorder %s26, 1
      %p105 = por %p103, %p104
      %p107 = scmp.ne.s32.totalorder %s92, %s106
      %p108 = scmp.eq.s32.totalorder %s26, 0
      %p109 = por %p107, %p108
      %s111 = sadd.s32 %s110, 1
      %p114 = scmp.eq.s32.totalorder %s20, 1
      %p115 = scmp.ne.s32.totalorder %s110, %s112
      %p116 = scmp.eq.s32.totalorder %s20, 0
      %p117 = por %p115, %p116
      %p118 = scmp.ne.s32.totalorder %s110, %s112
      %p119 = scmp.eq.s32.totalorder %s25, 1
      %p120 = por %p118, %p119
      %p121 = scmp.ne.s32.totalorder %s112, %s113
      %p122 = scmp.eq.s32.totalorder %s25, 0
      %p123 = por %p121, %p122
      %p124 = scmp.ne.s32.totalorder %s112, %s113
      %p125 = scmp.eq.s32.totalorder %s26, 1
      %p126 = por %p124, %p125
      %p128 = scmp.ne.s32.totalorder %s113, %s127
      %p129 = scmp.eq.s32.totalorder %s26, 0
      %p130 = por %p128, %p129
      %s132 = sadd.s32 %s131, 1
      %p135 = scmp.eq.s32.totalorder %s20, 1
      %p136 = scmp.ne.s32.totalorder %s131, %s133
      %p137 = scmp.eq.s32.totalorder %s20, 0
      %p138 = por %p136, %p137
      %p139 = scmp.ne.s32.totalorder %s131, %s133
      %p140 = scmp.eq.s32.totalorder %s25, 1
      %p141 = por %p139, %p140
      %p142 = scmp.ne.s32.totalorder %s133, %s134
      %p143 = scmp.eq.s32.totalorder %s25, 0
      %p144 = por %p142, %p143
      %p145 = scmp.ne.s32.totalorder %s133, %s134
      %p146 = scmp.eq.s32.totalorder %s26, 1
      %p147 = por %p145, %p146
      %p149 = scmp.ne.s32.totalorder %s134, %s148
      %p150 = scmp.eq.s32.totalorder %s26, 0
      %p151 = por %p149, %p150
      %s152 = ssub.s32 %s28, %s35
      %p153 = scmp.eq.s32.totalorder %s152, 0
      %s155 = sadd.s32 %s154, 1
      %s156 = scalar_select %p153, %s154, %s155
      %p159 = pneg %p153
      %p160 = scmp.eq.s32.totalorder %s20, 1
      %p161 = por %p159, %p160
      %p162 = scmp.ne.s32.totalorder %s154, %s157
      %p163 = scmp.eq.s32.totalorder %s20, 0
      %p164 = por %p162, %p163
      %p165 = scmp.ne.s32.totalorder %s154, %s157
      %p166 = scmp.eq.s32.totalorder %s25, 1
      %p167 = por %p165, %p166
      %p168 = scmp.ne.s32.totalorder %s157, %s158
      %p169 = scmp.eq.s32.totalorder %s25, 0
      %p170 = por %p168, %p169
      %p171 = scmp.ne.s32.totalorder %s157, %s158
      %p172 = scmp.eq.s32.totalorder %s26, 1
      %p173 = por %p171, %p172
      %p175 = scmp.ne.s32.totalorder %s158, %s174
      %p176 = scmp.eq.s32.totalorder %s26, 0
      %p177 = por %p175, %p176
      %s178 = ssub.s32 %s27, %s39
      %s179 = ssub.s32 %s28, %s35
      %s180 = sor.u32 %s178, %s179
      %p181 = scmp.eq.s32.totalorder %s180, 0
      %s183 = sadd.s32 %s182, 1
      %s184 = scalar_select %p181, %s182, %s183
      %p187 = pneg %p181
      %p188 = scmp.eq.s32.totalorder %s20, 1
      %p189 = por %p187, %p188
      %p190 = scmp.ne.s32.totalorder %s182, %s185
      %p191 = scmp.eq.s32.totalorder %s20, 0
      %p192 = por %p190, %p191
      %p193 = scmp.ne.s32.totalorder %s182, %s185
      %p194 = scmp.eq.s32.totalorder %s25, 1
      %p195 = por %p193, %p194
      %p196 = scmp.ne.s32.totalorder %s185, %s186
      %p197 = scmp.eq.s32.totalorder %s25, 0
      %p198 = por %p196, %p197
      %p199 = scmp.ne.s32.totalorder %s185, %s186
      %p200 = scmp.eq.s32.totalorder %s26, 1
      %p201 = por %p199, %p200
      %p203 = scmp.ne.s32.totalorder %s186, %s202
      %p204 = scmp.eq.s32.totalorder %s26, 0
      %p205 = por %p203, %p204
      %p206 = scmp.le.s32.totalorder 1, %s20
      %p207 = scmp.lt.s32.totalorder %s20, 3
      %p208 = pnand %p206, %p207
      %p209 = pneg %p208
      // Predicated region
      $region9: #{tpu_custom_call.1} parent=5 // pred_check
        _
      $region10: #{tpu_custom_call.1} parent=5 // pred_check_branch
        %211 = sbr.rel (%p208) target = $region12
      $region11: #{tpu_custom_call.1} parent=5 // pred_region
        %s212 = ssub.s32 %s20, 1
        // Predicated region
        $region13: #{tpu_custom_call.1} parent=11 // pred_check
          %p213 = pneg %p81
        $region14: #{tpu_custom_call.1} parent=11 // pred_check_branch
          %215 = sbr.rel (%p213) target = $region16
        $region15: #{tpu_custom_call.1} parent=11 // pred_region
          %217 = vsyncadd [#allocation6], 0
          %s218 = sshll.u32 %s1, 4
          %s219 = int_to_ptr.hbm [resolvable:$true] %s218
          %s220 = sshll.u32 [#allocation5], 4
          %s221 = int_to_ptr.vmem [resolvable:$true] %s220
          %226 = dma.hbm_to_vmem [thread:$0]  %s219, 512, %s221, [#allocation6], 128, 128, 8
        $region16: #{tpu_custom_call.1} parent=11 // pred_fallthru
          _
        // Predicated region
        $region17: #{tpu_custom_call.1} parent=11 // pred_check
          %p227 = pneg %p102
        $region18: #{tpu_custom_call.1} parent=11 // pred_check_branch
          %229 = sbr.rel (%p227) target = $region20
        $region19: #{tpu_custom_call.1} parent=11 // pred_region
          %231 = vsyncadd [#allocation6], 0
          %s233 = sshll.u32 %s2, 4
          %s234 = int_to_ptr.hbm [resolvable:$true] %s233
          %s235 = sshll.u32 [#allocation7], 4
          %s236 = int_to_ptr.vmem [resolvable:$true] %s235
          %238 = dma.hbm_to_vmem [thread:$0]  %s234, 32, %s236, [#allocation6]
        $region20: #{tpu_custom_call.1} parent=11 // pred_fallthru
          _
        // Predicated region
        $region21: #{tpu_custom_call.1} parent=11 // pred_check
          %p239 = pneg %p123
        $region22: #{tpu_custom_call.1} parent=11 // pred_check_branch
          %241 = sbr.rel (%p239) target = $region24
        $region23: #{tpu_custom_call.1} parent=11 // pred_region
          _
        $region24: #{tpu_custom_call.1} parent=11 // pred_fallthru
          _
        // Predicated region
        $region25: #{tpu_custom_call.1} parent=11 // pred_check
          %p242 = pneg %p144
        $region26: #{tpu_custom_call.1} parent=11 // pred_check_branch
          %244 = sbr.rel (%p242) target = $region28
        $region27: #{tpu_custom_call.1} parent=11 // pred_region
          %246 = vsyncadd [#allocation9], 0
          %s248 = sshll.u32 %s4, 4
          %s249 = int_to_ptr.hbm [resolvable:$true] %s248
          %s250 = sshll.u32 [#allocation8], 4
          %s251 = int_to_ptr.vmem [resolvable:$true] %s250
          %253 = dma.hbm_to_vmem [thread:$0]  %s249, 32, %s251, [#allocation9]
        $region28: #{tpu_custom_call.1} parent=11 // pred_fallthru
          _
        // Predicated region
        $region29: #{tpu_custom_call.1} parent=11 // pred_check
          %p254 = pneg %p170
        $region30: #{tpu_custom_call.1} parent=11 // pred_check_branch
          %256 = sbr.rel (%p254) target = $region32
        $region31: #{tpu_custom_call.1} parent=11 // pred_region
          %s257 = smul.u32 2, %s30
          %259 = vsyncadd [#allocation9], 0
          %s260 = smul.addr %s257, 2
          %s261 = smul.addr %s260, 8
          %s262 = scalar_lea.hbm %s5, %s261
          %s263 = sshll.u32 %s262, 4
          %s264 = int_to_ptr.hbm [resolvable:$true] %s263
          %s265 = sshll.u32 [#allocation10], 4
          %s266 = int_to_ptr.vmem [resolvable:$true] %s265
          %271 = dma.hbm_to_vmem [thread:$0]  %s264, 512, %s266, [#allocation9], 256, 256, 16
        $region32: #{tpu_custom_call.1} parent=11 // pred_fallthru
          _
      $region12: #{tpu_custom_call.1} parent=5 // pred_fallthru
        _
      %p272 = scmp.lt.s32.totalorder %s20, 2
      // Predicated region
      $region33: #{tpu_custom_call.1} parent=5 // pred_check
        %p273 = pneg %p272
      $region34: #{tpu_custom_call.1} parent=5 // pred_check_branch
        %275 = sbr.rel (%p273) target = $region36
      $region35: #{tpu_custom_call.1} parent=5 // pred_region
        // Predicated region
        $region37: #{tpu_custom_call.1} parent=35 // pred_check
          %p276 = pneg %p54
        $region38: #{tpu_custom_call.1} parent=35 // pred_check_branch
          %278 = sbr.rel (%p276) target = $region40
        $region39: #{tpu_custom_call.1} parent=35 // pred_region
          %s279 = sand.u32 %s44, 1
          %s280 = scalar_lea.sflag [#allocation3], %s279
          %s281 = sand.u32 %s44, 1
          %s282 = smul.addr %s281, 16
          %s283 = scalar_lea.vmem [#allocation2], %s282
          %s284 = smul.u32 2, %s28
          %286 = vsyncadd %s280, 0
          %s287 = smul.addr %s27, 2
          %s288 = sadd.s32 %s284, %s287
          %s289 = smul.addr %s288, 8
          %s290 = scalar_lea.hbm %s0, %s289
          %s291 = sshll.u32 %s290, 4
          %s292 = int_to_ptr.hbm [resolvable:$true] %s291
          %s293 = sshll.u32 %s283, 4
          %s294 = int_to_ptr.vmem [resolvable:$true] %s293
          %299 = dma.hbm_to_vmem [thread:$0]  %s292, 256, %s294, %s280, 128, 128, 8
        $region40: #{tpu_custom_call.1} parent=35 // pred_fallthru
          _
      $region36: #{tpu_custom_call.1} parent=5 // pred_fallthru
        _
      %p300 = scmp.le.s32.totalorder 1, %s20
      %p301 = scmp.lt.s32.totalorder %s20, 3
      %p302 = pnand %p300, %p301
      %p303 = pneg %p302
      // Predicated region
      $region41: #{tpu_custom_call.1} parent=5 // pred_check
        _
      $region42: #{tpu_custom_call.1} parent=5 // pred_check_branch
        %305 = sbr.rel (%p302) target = $region44
      $region43: #{tpu_custom_call.1} parent=5 // pred_region
        %s306 = ssub.s32 %s20, 1
        %s307 = sand.u32 %s47, 1
        %s308 = scalar_lea.sflag [#allocation3], %s307
        %s309 = sand.u32 %s47, 1
        %s310 = smul.addr %s309, 16
        %s311 = scalar_lea.vmem [#allocation2], %s310
        // Predicated region
        $region45: #{tpu_custom_call.1} parent=43 // pred_check
          %p312 = pneg %p60
        $region46: #{tpu_custom_call.1} parent=43 // pred_check_branch
          %314 = sbr.rel (%p312) target = $region48
        $region47: #{tpu_custom_call.1} parent=43 // pred_region
          %316 = dma.done %s308, 256
        $region48: #{tpu_custom_call.1} parent=43 // pred_fallthru
          _
        // Predicated region
        $region49: #{tpu_custom_call.1} parent=43 // pred_check
          %p317 = pneg %p81
        $region50: #{tpu_custom_call.1} parent=43 // pred_check_branch
          %319 = sbr.rel (%p317) target = $region52
        $region51: #{tpu_custom_call.1} parent=43 // pred_region
          %321 = dma.done [#allocation6], 512
        $region52: #{tpu_custom_call.1} parent=43 // pred_fallthru
          _
        // Predicated region
        $region53: #{tpu_custom_call.1} parent=43 // pred_check
          %p322 = pneg %p102
        $region54: #{tpu_custom_call.1} parent=43 // pred_check_branch
          %324 = sbr.rel (%p322) target = $region56
        $region55: #{tpu_custom_call.1} parent=43 // pred_region
          %326 = dma.done [#allocation6], 32
        $region56: #{tpu_custom_call.1} parent=43 // pred_fallthru
          _
        // Predicated region
        $region57: #{tpu_custom_call.1} parent=43 // pred_check
          %p327 = pneg %p144
        $region58: #{tpu_custom_call.1} parent=43 // pred_check_branch
          %329 = sbr.rel (%p327) target = $region60
        $region59: #{tpu_custom_call.1} parent=43 // pred_region
          %331 = dma.done [#allocation9], 32
        $region60: #{tpu_custom_call.1} parent=43 // pred_fallthru
          _
        // Predicated region
        $region61: #{tpu_custom_call.1} parent=43 // pred_check
          %p332 = pneg %p170
        $region62: #{tpu_custom_call.1} parent=43 // pred_check_branch
          %334 = sbr.rel (%p332) target = $region64
        $region63: #{tpu_custom_call.1} parent=43 // pred_region
          %336 = dma.done [#allocation9], 512
        $region64: #{tpu_custom_call.1} parent=43 // pred_fallthru
          _
        %s337 = sand.u32 %s47, 1
        %s338 = scalar_lea.sflag [#allocation3], %s337
        %s339 = sand.u32 %s47, 1
        %s340 = smul.addr %s339, 16
        %s341 = scalar_lea.vmem [#allocation2], %s340
        %p342 = pneg %p60
        %p343 = pneg %p57
        %p344 = pneg %p81
        %p345 = pneg %p78
        %p346 = pneg %p102
        %p347 = pneg %p99
        %p348 = pneg %p123
        %p349 = pneg %p120
        %p350 = pneg %p144
        %p351 = pneg %p141
        %p352 = pneg %p170
        %p353 = pneg %p167
        %p354 = pneg %p198
        %p355 = pneg %p195
        %s356 = sand.u32 %s185, 1
        %s357 = scalar_lea.sflag [#allocation4], %s356
        %s358 = sand.u32 %s185, 1
        %s359 = smul.addr %s358, 16
        %s360 = scalar_lea.vmem [#allocation11], %s359
        %s361 = smul.u32 2, %s30
        %s362 = smul.u32 2, %s30
        %s363 = smul.u32 2, %s30
        %v365 = vld [vmem:[%s311] sm:$0xff]
        %v366 = vld [vmem:[%s311 + $0x8] sm:$0xff]
        %v367 = vpack.c.bf16 %v366, %v365
        %v368 = vld [vmem:[#allocation5] sm:$0xff]
        %v369 = vld [vmem:[#allocation5 + $0x8] sm:$0xff]
        %v370 = vld [vmem:[#allocation5 + $0x10] sm:$0xff]
        %v371 = vld [vmem:[#allocation5 + $0x18] sm:$0xff]
        %v372 = vld [vmem:[#allocation7] sm:$0x3]
        %v374 = vperm.slane %v372, 0
        %v375 = vperm.slane %v372, 1
        %v382 = vunpack.c.l.b16 %v368
        %v383 = vunpack.c.h.b16 %v368
        %v384 = vunpack.c.l.b16 %v369
        %v385 = vunpack.c.h.b16 %v369
        %v386 = vunpack.c.l.b16 %v370
        %v387 = vunpack.c.h.b16 %v370
        %v388 = vunpack.c.l.b16 %v371
        %v389 = vunpack.c.h.b16 %v371
        %v390 = vpack.c.b16 %v384, %v382
        %v391 = vpack.c.b16 %v385, %v383
        %v392 = vpack.c.b16 %v388, %v386
        %v393 = vpack.c.b16 %v389, %v387
        %vm398 = vcmask 261120
        %v400 = vsel %vm398, %v367, 0
        %402 = vmatpush.bf16.msra.mxu0 0
        %403 = vmatpush.bf16.msra.mxu0 0
        %404 = vmatpush.bf16.msra.mxu0 0
        %405 = vmatpush.bf16.msra.mxu0 0
        %406 = vmatpush.bf16.msra.mxu0 0
        %407 = vmatpush.bf16.msra.mxu0 0
        %408 = vmatpush.bf16.msra.mxu0 %v392
        %409 = vmatpush.bf16.msra.mxu0 %v390
        %410 = vmatmul.bf16.gmra.mxu0 %v400
        %v411 = vpop.f32.mrf.mxu0
        %v412 = vadd.f32 %v374, %v411
        %v413 = vpop.f32.mrf.mxu0
        %v414 = vadd.f32 %v374, %v413
        %415 = vdwg.mxu0
        %416 = vmatpush.bf16.msra.mxu0 0
        %417 = vmatpush.bf16.msra.mxu0 0
        %418 = vmatpush.bf16.msra.mxu0 0
        %419 = vmatpush.bf16.msra.mxu0 0
        %420 = vmatpush.bf16.msra.mxu0 0
        %421 = vmatpush.bf16.msra.mxu0 0
        %422 = vmatpush.bf16.msra.mxu0 %v393
        %423 = vmatpush.bf16.msra.mxu0 %v391
        %424 = vmatmul.bf16.gmra.mxu0 %v400
        %v425 = vpop.f32.mrf.mxu0
        %v426 = vadd.f32 %v375, %v425
        %v427 = vpop.f32.mrf.mxu0
        %v428 = vadd.f32 %v375, %v427
        %429 = vdwg.mxu0
        %v430 = vadd.f32 %v412, %v426
        %431 = vadd.xlane.f32.xlu0 %v430
        %v432 = vpop.xlane.xlu0 %431
        %v433 = vadd.f32 %v414, %v428
        %434 = vadd.xlane.f32.xlu0 %v433
        %v435 = vpop.xlane.xlu0 %434
        %v436 = vrcp.pop 256.0
        %v437 = vmul.f32 256.0, %v436
        %v438 = vsub.f32 1.0, %v437
        %v439 = vmul.f32 %v436, %v438
        %v440 = vadd.f32 %v436, %v439
        %vm441 = vweird.f32 %v436
        %v442 = vsel %vm441, %v436, %v440
        %v443 = vmul.f32 %v432, %v442
        %v444 = vmul.f32 %v435, %v442
        %v445 = vsub.f32 %v412, %v443
        %v446 = vsub.f32 %v426, %v443
        %v447 = vsub.f32 %v414, %v444
        %v448 = vsub.f32 %v428, %v444
        %v449 = vmul.f32 %v445, %v445
        %v450 = vmul.f32 %v446, %v446
        %v451 = vmul.f32 %v447, %v447
        %v452 = vmul.f32 %v448, %v448
        %v453 = vadd.f32 %v449, %v450
        %454 = vadd.xlane.f32.xlu0 %v453
        %v455 = vpop.xlane.xlu0 %454
        %v456 = vadd.f32 %v451, %v452
        %457 = vadd.xlane.f32.xlu0 %v456
        %v458 = vpop.xlane.xlu0 %457
        %v459 = vmul.f32 %v455, %v442
        %v460 = vmul.f32 %v458, %v442
        %v461 = vadd.f32 %v459, 1e-05
        %v462 = vadd.f32 %v460, 1e-05
        %v463 = vrsqrt.pop %v461
        %v464 = vmul.f32 %v463, %v461
        %v465 = vmul.f32 %v464, %v463
        %v466 = vmul.f32 0.5, %v465
        %v467 = vsub.f32 1.5, %v466
        %v468 = vmul.f32 %v463, %v467
        %vm469 = vweird.f32 %v461
        %vm470 = vweird.f32 %v463
        %vm471 = vmor %vm469, %vm470
        %v472 = vsel %vm471, %v463, %v468
        %v473 = vrsqrt.pop %v462
        %v474 = vmul.f32 %v473, %v462
        %v475 = vmul.f32 %v474, %v473
        %v476 = vmul.f32 0.5, %v475
        %v477 = vsub.f32 1.5, %v476
        %v478 = vmul.f32 %v473, %v477
        %vm479 = vweird.f32 %v462
        %vm480 = vweird.f32 %v473
        %vm481 = vmor %vm479, %vm480
        %v482 = vsel %vm481, %v473, %v478
        %v483 = vmul.f32 %v445, %v472
        %v484 = vmul.f32 %v446, %v472
        %v485 = vmul.f32 %v447, %v482
        %v486 = vmul.f32 %v448, %v482
        %v487 = vld [vmem:[%s3] sm:$0x3]
        %v489 = vperm.slane %v487, 0
        %v490 = vperm.slane %v487, 1
        %v493 = vmul.f32 %v483, %v489
        %v494 = vmul.f32 %v484, %v490
        %v495 = vmul.f32 %v485, %v489
        %v496 = vmul.f32 %v486, %v490
        %v497 = vld [vmem:[#allocation8] sm:$0x3]
        %v499 = vperm.slane %v497, 0
        %v500 = vperm.slane %v497, 1
        %v503 = vadd.f32 %v493, %v499
        %v504 = vadd.f32 %v494, %v500
        %v505 = vadd.f32 %v495, %v499
        %v506 = vadd.f32 %v496, %v500
        %v507 = vld [vmem:[#allocation10] sm:$0xff]
        %v508 = vld [vmem:[#allocation10 + $0x8] sm:$0xff]
        %v509 = vld [vmem:[#allocation10 + $0x10] sm:$0xff]
        %v510 = vld [vmem:[#allocation10 + $0x18] sm:$0xff]
        %v511 = vadd.f32 %v503, %v507
        %v512 = vadd.f32 %v504, %v508
        %v513 = vadd.f32 %v505, %v509
        %v514 = vadd.f32 %v506, %v510
        %v515 = vpack.c.bf16 %v512, %v511
        %v516 = vpack.c.bf16 %v514, %v513
        %517 = vst [vmem:[%s360] sm:$0xff] %v515
        %518 = vst [vmem:[%s360 + $0x8] sm:$0xff] %v516
        %s519 = sand.u32 %s185, 1
        %s520 = scalar_lea.sflag [#allocation4], %s519
        %s521 = sand.u32 %s185, 1
        %s522 = smul.addr %s521, 16
        %s523 = scalar_lea.vmem [#allocation11], %s522
        // Predicated region
        $region65: #{tpu_custom_call.1} parent=43 // pred_check
          %p524 = pneg %p195
        $region66: #{tpu_custom_call.1} parent=43 // pred_check_branch
          %526 = sbr.rel (%p524) target = $region68
        $region67: #{tpu_custom_call.1} parent=43 // pred_region
          %s527 = smul.u32 2, %s30
          %529 = vsyncadd %s520, 0
          %s530 = smul.addr %s527, 2
          %s531 = smul.addr %s29, 4
          %s532 = sadd.s32 %s530, %s531
          %s533 = smul.addr %s532, 4
          %s534 = scalar_lea.hbm %s6, %s533
          %s535 = sshll.u32 %s523, 4
          %s536 = int_to_ptr.vmem [resolvable:$true] %s535
          %s537 = sshll.u32 %s534, 4
          %s538 = int_to_ptr.hbm [resolvable:$true] %s537
          %543 = dma.vmem_to_hbm [thread:$0]  %s536, 256, %s538, %s520, 128, 128, 8
        $region68: #{tpu_custom_call.1} parent=43 // pred_fallthru
          _
      $region44: #{tpu_custom_call.1} parent=5 // pred_fallthru
        _
      %p544 = scmp.le.s32.totalorder 2, %s20
      // Predicated region
      $region69: #{tpu_custom_call.1} parent=5 // pred_check
        %p545 = pneg %p544
      $region70: #{tpu_custom_call.1} parent=5 // pred_check_branch
        %547 = sbr.rel (%p545) target = $region72
      $region71: #{tpu_custom_call.1} parent=5 // pred_region
        %s548 = ssub.s32 %s20, 2
        // Predicated region
        $region73: #{tpu_custom_call.1} parent=71 // pred_check
          %p549 = pneg %p201
        $region74: #{tpu_custom_call.1} parent=71 // pred_check_branch
          %551 = sbr.rel (%p549) target = $region76
        $region75: #{tpu_custom_call.1} parent=71 // pred_region
          %s552 = sand.u32 %s186, 1
          %s553 = scalar_lea.sflag [#allocation4], %s552
          %s554 = sand.u32 %s186, 1
          %s555 = smul.addr %s554, 16
          %s556 = scalar_lea.vmem [#allocation11], %s555
          %558 = dma.done %s553, 256
        $region76: #{tpu_custom_call.1} parent=71 // pred_fallthru
          _
      $region72: #{tpu_custom_call.1} parent=5 // pred_fallthru
        _
    $region6: #{tpu_custom_call.1} parent=1 // loop_footer
      %s24 = sadd.s32 1, %s20
    $region7: #{tpu_custom_call.1} parent=1 // loop_footer_branch
      %19 = sbr.rel target = $region3
    $region8: #{tpu_custom_call.1} parent=1 // loop_exit
      _
    %559 = vsyncpa [#allocation3], 1
    %s560 = scalar_lea.sflag [#allocation3], 1
    %561 = vsyncpa %s560, 1
    %562 = vsyncpa [#allocation6], 1
    %563 = vsyncpa [#allocation9], 1
    %564 = vsyncpa [#allocation4], 1
    %s565 = scalar_lea.sflag [#allocation4], 1
    %566 = vsyncpa %s565, 1

</llo_original>
